<compile_context>
chip_gen: v7x
topology: tpu7x:2x2x1
jax: 0.10.0
libtpu: 0.0.40
codegen_flags: <defaults>
</compile_context>

<pallas_src>
import math

import jax
import jax.numpy as jnp
from jax.experimental import pallas as pl
from jax.experimental.pallas import tpu as pltpu


def _round_up(n, m):
    return ((n + m - 1) // m) * m


def _pick_tile(n, target, align):
    """Largest tile t <= target that divides n and is a multiple of `align`;
    falls back to the full dimension if none exists (satisfies the (8,128)
    'divisible or full-dim' BlockSpec rule)."""
    if n <= target:
        return n
    t = (target // align) * align
    while t >= align:
        if n % t == 0:
            return t
        t -= align
    return n


def gcn_classifier_kernel(x_ref, adj_ref, w_gc_ref, b_gc_ref,
                          w_mlp_ref, b_mlp_ref, out_ref, acc_ref):
    k = pl.program_id(1)

    @pl.when(k == 0)
    def _init():
        acc_ref[...] = jnp.zeros_like(acc_ref)

    # support_k = x[k-tile] @ W_gc  -> (bk, H), f32 accumulation on the MXU.
    support = jnp.dot(x_ref[...], w_gc_ref[...],
                      preferred_element_type=jnp.float32)
    # acc += adj[i-tile, k-tile] @ support_k  -> (bm, H)
    acc_ref[...] += jnp.dot(adj_ref[...], support.astype(adj_ref.dtype),
                            preferred_element_type=jnp.float32)

    @pl.when(k == pl.num_programs(1) - 1)
    def _finalize():
        # GraphConvolution bias + ReLU (dropout = identity in eval mode).
        h = jnp.maximum(acc_ref[...] + b_gc_ref[...], 0.0)
        # MLP head on the padded, lane-dense (H, C) weight.
        logits = jnp.dot(h.astype(w_mlp_ref.dtype), w_mlp_ref[...],
                         preferred_element_type=jnp.float32) + b_mlp_ref[...]
        out_ref[...] = logits.astype(out_ref.dtype)


def gcn_classifier_forward(x, adj, w_gc, b_gc, w_mlp, b_mlp,
                           *, block_m=None, block_k=None, compute_dtype=None):
    """x: (N, nembed), adj: (N, N), w_gc: (nembed, nhid), b_gc: (nhid,),
    w_mlp: (nclass, nhid), b_mlp: (nclass,).  Returns logits (N, nclass)."""
    n, nembed = x.shape
    nhid = w_gc.shape[1]
    nclass = w_mlp.shape[0]

    # Lane-dense padded hidden / class dims (multiples of 128).
    hpad = _round_up(nhid, 128)
    cpad = _round_up(nclass, 128)

    f32 = jnp.float32
    # One-time parameter prep (padding + transpose); in a serving loop this
    # would be cached at parameter-load time.
    w_gc_p = jnp.zeros((nembed, hpad), f32).at[:, :nhid].set(w_gc)
    b_gc_p = jnp.zeros((1, hpad), f32).at[:, :nhid].set(b_gc)
    w_mlp_p = jnp.zeros((hpad, cpad), f32).at[:nhid, :nclass].set(w_mlp.T)
    b_mlp_p = jnp.zeros((1, cpad), f32).at[:, :nclass].set(b_mlp)

    x_c, adj_c = x, adj
    if compute_dtype is not None:
        x_c = x_c.astype(compute_dtype)
        adj_c = adj_c.astype(compute_dtype)
        w_gc_p = w_gc_p.astype(compute_dtype)
        w_mlp_p = w_mlp_p.astype(compute_dtype)

    if block_m is None:
        block_m = _pick_tile(n, 256, 8)     # output-row tile
    if block_k is None:
        block_k = _pick_tile(n, 512, 128)   # adj-column / x-row tile
    assert n % block_m == 0 and n % block_k == 0

    grid = (n // block_m, n // block_k)

    out_padded = pl.pallas_call(
        gcn_classifier_kernel,
        out_shape=jax.ShapeDtypeStruct((n, cpad), f32),
        grid_spec=pltpu.PrefetchScalarGridSpec(
            num_scalar_prefetch=0,
            grid=grid,
            in_specs=[
                pl.BlockSpec((block_k, nembed), lambda i, k: (k, 0)),   # x rows
                pl.BlockSpec((block_m, block_k), lambda i, k: (i, k)),  # adj tile
                pl.BlockSpec((nembed, hpad), lambda i, k: (0, 0)),      # W_gc
                pl.BlockSpec((1, hpad), lambda i, k: (0, 0)),           # b_gc
                pl.BlockSpec((hpad, cpad), lambda i, k: (0, 0)),        # W_mlp^T
                pl.BlockSpec((1, cpad), lambda i, k: (0, 0)),           # b_mlp
            ],
            out_specs=pl.BlockSpec((block_m, cpad), lambda i, k: (i, 0)),
            scratch_shapes=[pltpu.VMEM((block_m, hpad), jnp.float32)],
        ),
        compiler_params=pltpu.CompilerParams(
            dimension_semantics=("parallel", "arbitrary")),
    )(x_c, adj_c, w_gc_p, b_gc_p, w_mlp_p, b_mlp_p)

    return out_padded[:, :nclass]


def reference_forward(x, adj, w_gc, b_gc, w_mlp, b_mlp):
    support = x @ w_gc
    h = adj @ support + b_gc
    h = jnp.maximum(h, 0.0)
    return h @ w_mlp.T + b_mlp


if __name__ == "__main__":
    # Small shapes consistent with the module.
    N = 16        # number of graph nodes
    nembed = 32   # input feature dim
    nhid = 32     # hidden dim
    nclass = 8    # number of classes

    key = jax.random.PRNGKey(0)
    k_x, k_adj, k_wgc, k_bgc, k_wmlp, k_bmlp = jax.random.split(key, 6)

    # Inputs.
    x = jax.random.normal(k_x, (N, nembed), dtype=jnp.float32)
    # Symmetric row-normalized-ish adjacency (dense).
    a = jax.random.uniform(k_adj, (N, N), dtype=jnp.float32)
    a = (a + a.T) * 0.5 + jnp.eye(N, dtype=jnp.float32)
    adj = a / jnp.sum(a, axis=1, keepdims=True)

    # Parameters (mirroring the PyTorch module's inits).
    stdv = 1.0 / math.sqrt(nhid)
    w_gc = jax.random.uniform(k_wgc, (nembed, nhid),
                              minval=-stdv, maxval=stdv, dtype=jnp.float32)
    b_gc = jax.random.uniform(k_bgc, (nhid,),
                              minval=-stdv, maxval=stdv, dtype=jnp.float32)
    w_mlp = 0.05 * jax.random.normal(k_wmlp, (nclass, nhid), dtype=jnp.float32)
    bound = 1.0 / math.sqrt(nhid)
    b_mlp = jax.random.uniform(k_bmlp, (nclass,),
                               minval=-bound, maxval=bound, dtype=jnp.float32)

    ref = reference_forward(x, adj, w_gc, b_gc, w_mlp, b_mlp)

    # f32 path: block_m=8 gives a 2-wide "parallel" row axis (v7x megacore).
    out = gcn_classifier_forward(x, adj, w_gc, b_gc, w_mlp, b_mlp, block_m=8)
    out = jax.block_until_ready(out)
    assert out.shape == (N, nclass)
    assert jnp.allclose(out, ref, atol=1e-5, rtol=1e-5), "f32 mismatch vs reference"

    # bf16 compute path (f32 accumulation) for the v6e/v7x MXU.
    out_bf16 = gcn_classifier_forward(x, adj, w_gc, b_gc, w_mlp, b_mlp,
                                      block_m=8, compute_dtype=jnp.bfloat16)
    out_bf16 = jax.block_until_ready(out_bf16)
    assert jnp.allclose(out_bf16, ref, atol=5e-2, rtol=5e-2), "bf16 mismatch vs reference"

    print("KERNEL_OK")
</pallas_src>

<mosaic_0001>
module attributes {stable_mosaic.version = 11 : i64} {
  func.func @gcn_classifier_kernel(%arg0: i32, %arg1: i32, %arg2: memref<16x32xf32, #tpu.memory_space<vmem>>, %arg3: memref<8x16xf32, #tpu.memory_space<vmem>>, %arg4: memref<32x128xf32, #tpu.memory_space<vmem>>, %arg5: memref<1x128xf32, #tpu.memory_space<vmem>>, %arg6: memref<128x128xf32, #tpu.memory_space<vmem>>, %arg7: memref<1x128xf32, #tpu.memory_space<vmem>>, %arg8: memref<8x128xf32, #tpu.memory_space<vmem>>, %arg9: memref<8x128xf32, #tpu.memory_space<vmem>>) attributes {dimension_semantics = [#tpu.dimension_semantics<parallel>, #tpu.dimension_semantics<arbitrary>], iteration_bounds = array<i64: 2, 1>, scalar_prefetch = 0 : i64, scratch_operands = 1 : i64, tpu.core_type = #tpu.core_type<tc>, window_params = [{transform_indices = @transform_0, window_bounds = array<i64: 16, 32>}, {transform_indices = @transform_1, window_bounds = array<i64: 8, 16>}, {pipeline_mode = #tpu.pipeline_mode<synchronous>, transform_indices = @transform_2, window_bounds = array<i64: 32, 128>}, {pipeline_mode = #tpu.pipeline_mode<synchronous>, transform_indices = @transform_3, window_bounds = array<i64: 1, 128>}, {pipeline_mode = #tpu.pipeline_mode<synchronous>, transform_indices = @transform_4, window_bounds = array<i64: 128, 128>}, {pipeline_mode = #tpu.pipeline_mode<synchronous>, transform_indices = @transform_5, window_bounds = array<i64: 1, 128>}, {transform_indices = @transform_6, window_bounds = array<i64: 8, 128>}]} {
    %c0_i32 = arith.constant 0 : i32
    %0 = arith.cmpi eq, %arg1, %c0_i32 : i32
    %1 = arith.extui %0 : i1 to i32
    %c0_i32_0 = arith.constant 0 : i32
    %2 = arith.cmpi ne, %1, %c0_i32_0 : i32
    scf.if %2 {
      %cst_13 = arith.constant 0.000000e+00 : f32
      %14 = vector.broadcast %cst_13 : f32 to vector<8x128xf32>
      %c0_14 = arith.constant 0 : index
      %c0_15 = arith.constant 0 : index
      %15 = vector.load %arg9[%c0_14, %c0_15] : memref<8x128xf32, #tpu.memory_space<vmem>>, vector<8x128xf32>
      tpu.vector_store %arg9[%c0_14, %c0_15], %14 {strides = array<i32>} : memref<8x128xf32, #tpu.memory_space<vmem>>, vector<8x128xf32>,
    } else {
    }
    %c0 = arith.constant 0 : index
    %c0_1 = arith.constant 0 : index
    %3 = vector.load %arg2[%c0, %c0_1] : memref<16x32xf32, #tpu.memory_space<vmem>>, vector<16x32xf32>
    %c0_2 = arith.constant 0 : index
    %c0_3 = arith.constant 0 : index
    %4 = vector.load %arg4[%c0_2, %c0_3] : memref<32x128xf32, #tpu.memory_space<vmem>>, vector<32x128xf32>
    %cst = arith.constant dense<0.000000e+00> : vector<16x128xf32>
    %5 = tpu.matmul %3, %4, %cst {dimension_numbers = #tpu.dot_dimension_numbers<[1], [0], [0], [1], [0, 0, 1, 1], [], []>} : vector<16x32xf32>, vector<32x128xf32>, vector<16x128xf32> -> vector<16x128xf32>
    %c0_4 = arith.constant 0 : index
    %c0_5 = arith.constant 0 : index
    %6 = vector.load %arg9[%c0_4, %c0_5] : memref<8x128xf32, #tpu.memory_space<vmem>>, vector<8x128xf32>
    %c0_6 = arith.constant 0 : index
    %c0_7 = arith.constant 0 : index
    %7 = vector.load %arg3[%c0_6, %c0_7] : memref<8x16xf32, #tpu.memory_space<vmem>>, vector<8x16xf32>
    %cst_8 = arith.constant dense<0.000000e+00> : vector<8x128xf32>
    %8 = tpu.matmul %7, %5, %cst_8 {dimension_numbers = #tpu.dot_dimension_numbers<[1], [0], [0], [1], [0, 0, 1, 1], [], []>} : vector<8x16xf32>, vector<16x128xf32>, vector<8x128xf32> -> vector<8x128xf32>
    %9 = arith.addf %6, %8 : vector<8x128xf32>
    %c0_9 = arith.constant 0 : index
    %c0_10 = arith.constant 0 : index
    %10 = vector.load %arg9[%c0_9, %c0_10] : memref<8x128xf32, #tpu.memory_space<vmem>>, vector<8x128xf32>
    tpu.vector_store %arg9[%c0_9, %c0_10], %9 {strides = array<i32>} : memref<8x128xf32, #tpu.memory_space<vmem>>, vector<8x128xf32>,
    %c0_i32_11 = arith.constant 0 : i32
    %11 = arith.cmpi eq, %arg1, %c0_i32_11 : i32
    %12 = arith.extui %11 : i1 to i32
    %c0_i32_12 = arith.constant 0 : i32
    %13 = arith.cmpi ne, %12, %c0_i32_12 : i32
    scf.if %13 {
      %c0_13 = arith.constant 0 : index
      %c0_14 = arith.constant 0 : index
      %14 = vector.load %arg9[%c0_13, %c0_14] : memref<8x128xf32, #tpu.memory_space<vmem>>, vector<8x128xf32>
      %c0_15 = arith.constant 0 : index
      %c0_16 = arith.constant 0 : index
      %15 = vector.load %arg5[%c0_15, %c0_16] : memref<1x128xf32, #tpu.memory_space<vmem>>, vector<1x128xf32>
      %16 = vector.broadcast %15 : vector<1x128xf32> to vector<8x128xf32>
      %17 = arith.addf %14, %16 : vector<8x128xf32>
      %cst_17 = arith.constant 0.000000e+00 : f32
      %18 = vector.broadcast %cst_17 : f32 to vector<8x128xf32>
      %19 = arith.maximumf %17, %18 : vector<8x128xf32>
      %c0_18 = arith.constant 0 : index
      %c0_19 = arith.constant 0 : index
      %20 = vector.load %arg6[%c0_18, %c0_19] : memref<128x128xf32, #tpu.memory_space<vmem>>, vector<128x128xf32>
      %cst_20 = arith.constant dense<0.000000e+00> : vector<8x128xf32>
      %21 = tpu.matmul %19, %20, %cst_20 {dimension_numbers = #tpu.dot_dimension_numbers<[1], [0], [0], [1], [0, 0, 1, 1], [], []>} : vector<8x128xf32>, vector<128x128xf32>, vector<8x128xf32> -> vector<8x128xf32>
      %c0_21 = arith.constant 0 : index
      %c0_22 = arith.constant 0 : index
      %22 = vector.load %arg7[%c0_21, %c0_22] : memref<1x128xf32, #tpu.memory_space<vmem>>, vector<1x128xf32>
      %23 = vector.broadcast %22 : vector<1x128xf32> to vector<8x128xf32>
      %24 = arith.addf %21, %23 : vector<8x128xf32>
      %c0_23 = arith.constant 0 : index
      %c0_24 = arith.constant 0 : index
      %25 = vector.load %arg8[%c0_23, %c0_24] : memref<8x128xf32, #tpu.memory_space<vmem>>, vector<8x128xf32>
      tpu.vector_store %arg8[%c0_23, %c0_24], %24 {strides = array<i32>} : memref<8x128xf32, #tpu.memory_space<vmem>>, vector<8x128xf32>,
    } else {
    }
    return
  }
  func.func @transform_0(%arg0: i32, %arg1: i32) -> (i32, i32) {
    %c0_i32 = arith.constant 0 : i32
    %c0_i32_0 = arith.constant 0 : i32
    return %arg1, %c0_i32 : i32, i32
  }
  func.func @transform_1(%arg0: i32, %arg1: i32) -> (i32, i32) {
    %c0_i32 = arith.constant 0 : i32
    return %arg0, %arg1 : i32, i32
  }
  func.func @transform_2(%arg0: i32, %arg1: i32) -> (i32, i32) {
    %c0_i32 = arith.constant 0 : i32
    %c0_i32_0 = arith.constant 0 : i32
    %c0_i32_1 = arith.constant 0 : i32
    return %c0_i32, %c0_i32_0 : i32, i32
  }
  func.func @transform_3(%arg0: i32, %arg1: i32) -> (i32, i32) {
    %c0_i32 = arith.constant 0 : i32
    %c0_i32_0 = arith.constant 0 : i32
    %c0_i32_1 = arith.constant 0 : i32
    return %c0_i32, %c0_i32_0 : i32, i32
  }
  func.func @transform_4(%arg0: i32, %arg1: i32) -> (i32, i32) {
    %c0_i32 = arith.constant 0 : i32
    %c0_i32_0 = arith.constant 0 : i32
    %c0_i32_1 = arith.constant 0 : i32
    return %c0_i32, %c0_i32_0 : i32, i32
  }
  func.func @transform_5(%arg0: i32, %arg1: i32) -> (i32, i32) {
    %c0_i32 = arith.constant 0 : i32
    %c0_i32_0 = arith.constant 0 : i32
    %c0_i32_1 = arith.constant 0 : i32
    return %c0_i32, %c0_i32_0 : i32, i32
  }
  func.func @transform_6(%arg0: i32, %arg1: i32) -> (i32, i32) {
    %c0_i32 = arith.constant 0 : i32
    %c0_i32_0 = arith.constant 0 : i32
    return %arg0, %c0_i32 : i32, i32
  }
}

</mosaic_0001>

<llo_original>
// kernel: tpu_custom_call.1
$region0: #{tpu_custom_call.1}
  #allocation0 [shape = 'u32[]', space=smem, size = 0x4, offset = 0x4, fixed_abs, tag = 'smem constant byte address 0x4 - core index']
  #allocation1 [shape = 'u32[144,128]{1,0:T(1,128)}', space=vmem, size = 0x12000, scoped, tag = 'internal scratch']
  #allocation2 [shape = 'f32[8,128]{1,0:T(8,128)}', space=vmem, size = 0x1000, scoped, tag = 'scratch operand']
  %s0 = inlined_call_operand.hbm [shape: f32[16,32], index: 0, kind: input, shape index: {}]
  %s1 = inlined_call_operand.hbm [shape: f32[16,16], index: 1, kind: input, shape index: {}]
  %s2 = inlined_call_operand.hbm [shape: f32[32,128], index: 2, kind: input, shape index: {}]
  %s3 = inlined_call_operand.vmem [shape: f32[1,128], index: 3, kind: input, shape index: {}]
  %s4 = inlined_call_operand.hbm [shape: f32[128,128], index: 4, kind: input, shape index: {}]
  %s5 = inlined_call_operand.vmem [shape: f32[1,128], index: 5, kind: input, shape index: {}]
  %s6 = inlined_call_operand.hbm [shape: f32[16,128], index: 6, kind: output, shape index: {}]
  %s7 = sld [smem:[#allocation0]]
  $region81: #{tpu_custom_call.1} parent=0
    _
  %s9 = ssub.s32 1, %s7
  %s10 = scalar_select 0, %s9, %s7
  $region1: #{tpu_custom_call.1} parent=0
    #allocation3 [shape = 'u8[8192]{0}', space=vmem, size = 0x2000, scoped, tag = 'input window, operand 0, single buffered']
    #allocation4 [shape = 's32[2]{0}', space=sflag, size = 0x8, scoped, tag = 'scoped memory for tpu_custom_call.1']
    #allocation5 [shape = 's32[2]{0}', space=sflag, size = 0x8, scoped, tag = 'scoped memory for tpu_custom_call.1']
    #allocation6 [shape = 'u8[8192]{0}', space=vmem, size = 0x2000, scoped, tag = 'input window, operand 1']
    #allocation7 [shape = 's32[2]{0}', space=sflag, size = 0x8, scoped, tag = 'scoped memory for tpu_custom_call.1']
    #allocation8 [shape = 'u8[16384]{0}', space=vmem, size = 0x4000, scoped, tag = 'input window, operand 2, single buffered']
    #allocation9 [shape = 'u8[65536]{0}', space=vmem, size = 0x10000, scoped, tag = 'input window, operand 4, single buffered']
    #allocation10 [shape = 's32[1]{0}', space=sflag, size = 0x4, scoped, tag = 'scoped memory for tpu_custom_call.1']
    #allocation11 [shape = 'u8[8192]{0}', space=vmem, size = 0x2000, scoped, tag = 'output window, operand 0']
    %11 = vsyncpa [#allocation4], 0
    %12 = vsyncpa [#allocation7], 0
    %s13 = scalar_lea.sflag [#allocation7], 1
    %14 = vsyncpa %s13, 0
    %15 = vsyncpa [#allocation10], 0
    %16 = vsyncpa [#allocation5], 0
    %s17 = scalar_lea.sflag [#allocation5], 1
    %18 = vsyncpa %s17, 0
    loop: start=0, step=1, limit=4
    $region2: #{tpu_custom_call.1} parent=1 // loop_pre_header
      _
    $region3: #{tpu_custom_call.1} parent=1 // loop_header
      %s20 = sphi 0, %s24
      %p21 = scmp.ge.s32.totalorder %s20, 4
      %s27 = sphi 0, %s39
      %s28 = sphi 0, %s35
      %s29 = sphi 0, %s27
      %s30 = sphi 0, %s28
      %s31 = sphi 0, %s29
      %s32 = sphi 0, %s30
      %s42 = sphi 0, %s44
      %s45 = sphi 0, %s42
      %s46 = sphi 0, %s45
      %s62 = sphi 0, %s46
      %s70 = sphi 0, %s72
      %s73 = sphi 0, %s70
      %s74 = sphi 0, %s73
      %s90 = sphi 0, %s74
      %s94 = sphi 0, %s94
      %s96 = sphi 0, %s94
      %s97 = sphi 0, %s96
      %s111 = sphi 0, %s97
      %s115 = sphi 0, %s115
      %s117 = sphi 0, %s115
      %s118 = sphi 0, %s117
      %s132 = sphi 0, %s118
      %s136 = sphi 0, %s136
      %s138 = sphi 0, %s136
      %s139 = sphi 0, %s138
      %s153 = sphi 0, %s139
      %s157 = sphi 0, %s157
      %s159 = sphi 0, %s157
      %s160 = sphi 0, %s159
      %s174 = sphi 0, %s160
      %s180 = sphi 0, %s182
      %s183 = sphi 0, %s180
      %s184 = sphi 0, %s183
      %s200 = sphi 0, %s184
    $region4: #{tpu_custom_call.1} parent=1 // loop_header_branch
      %23 = sbr.rel (%p21) target = $region8
    $region5: #{tpu_custom_call.1} parent=1 // loop_body
      %s25 = ssub.s32 %s20, 1
      %s26 = ssub.s32 %s20, 2
      %s33 = sadd.s32 1, %s28
      %p34 = scmp.ge.s32.totalorder %s33, 1
      %s35 = scalar_select %p34, 0, %s33
      %s36 = sadd.s32 1, %s27
      %s37 = scalar_select %p34, %s36, %s27
      %p38 = scmp.ge.s32.totalorder %s37, 2
      %s39 = scalar_select %p38, 0, %s37
      %s40 = ssub.s32 %s28, %s35
      %p41 = scmp.eq.s32.totalorder %s40, 0
      %s43 = sadd.s32 %s42, 1
      %s44 = scalar_select %p41, %s42, %s43
      %p47 = pneg %p41
      %p48 = scmp.eq.s32.totalorder %s20, 1
      %p49 = por %p47, %p48
      %p50 = scmp.ne.s32.totalorder %s42, %s45
      %p51 = scmp.eq.s32.totalorder %s20, 0
      %p52 = por %p50, %p51
      %p53 = scmp.ne.s32.totalorder %s42, %s45
      %p54 = scmp.eq.s32.totalorder %s25, 1
      %p55 = por %p53, %p54
      %p56 = scmp.ne.s32.totalorder %s45, %s46
      %p57 = scmp.eq.s32.totalorder %s25, 0
      %p58 = por %p56, %p57
      %p59 = scmp.ne.s32.totalorder %s45, %s46
      %p60 = scmp.eq.s32.totalorder %s26, 1
      %p61 = por %p59, %p60
      %p63 = scmp.ne.s32.totalorder %s46, %s62
      %p64 = scmp.eq.s32.totalorder %s26, 0
      %p65 = por %p63, %p64
      %s66 = ssub.s32 %s27, %s39
      %s67 = ssub.s32 %s28, %s35
      %s68 = sor.u32 %s66, %s67
      %p69 = scmp.eq.s32.totalorder %s68, 0
      %s71 = sadd.s32 %s70, 1
      %s72 = scalar_select %p69, %s70, %s71
      %p75 = pneg %p69
      %p76 = scmp.eq.s32.totalorder %s20, 1
      %p77 = por %p75, %p76
      %p78 = scmp.ne.s32.totalorder %s70, %s73
      %p79 = scmp.eq.s32.totalorder %s20, 0
      %p80 = por %p78, %p79
      %p81 = scmp.ne.s32.totalorder %s70, %s73
      %p82 = scmp.eq.s32.totalorder %s25, 1
      %p83 = por %p81, %p82
      %p84 = scmp.ne.s32.totalorder %s73, %s74
      %p85 = scmp.eq.s32.totalorder %s25, 0
      %p86 = por %p84, %p85
      %p87 = scmp.ne.s32.totalorder %s73, %s74
      %p88 = scmp.eq.s32.totalorder %s26, 1
      %p89 = por %p87, %p88
      %p91 = scmp.ne.s32.totalorder %s74, %s90
      %p92 = scmp.eq.s32.totalorder %s26, 0
      %p93 = por %p91, %p92
      %s95 = sadd.s32 %s94, 1
      %p98 = scmp.eq.s32.totalorder %s20, 1
      %p99 = scmp.ne.s32.totalorder %s94, %s96
      %p100 = scmp.eq.s32.totalorder %s20, 0
      %p101 = por %p99, %p100
      %p102 = scmp.ne.s32.totalorder %s94, %s96
      %p103 = scmp.eq.s32.totalorder %s25, 1
      %p104 = por %p102, %p103
      %p105 = scmp.ne.s32.totalorder %s96, %s97
      %p106 = scmp.eq.s32.totalorder %s25, 0
      %p107 = por %p105, %p106
      %p108 = scmp.ne.s32.totalorder %s96, %s97
      %p109 = scmp.eq.s32.totalorder %s26, 1
      %p110 = por %p108, %p109
      %p112 = scmp.ne.s32.totalorder %s97, %s111
      %p113 = scmp.eq.s32.totalorder %s26, 0
      %p114 = por %p112, %p113
      %s116 = sadd.s32 %s115, 1
      %p119 = scmp.eq.s32.totalorder %s20, 1
      %p120 = scmp.ne.s32.totalorder %s115, %s117
      %p121 = scmp.eq.s32.totalorder %s20, 0
      %p122 = por %p120, %p121
      %p123 = scmp.ne.s32.totalorder %s115, %s117
      %p124 = scmp.eq.s32.totalorder %s25, 1
      %p125 = por %p123, %p124
      %p126 = scmp.ne.s32.totalorder %s117, %s118
      %p127 = scmp.eq.s32.totalorder %s25, 0
      %p128 = por %p126, %p127
      %p129 = scmp.ne.s32.totalorder %s117, %s118
      %p130 = scmp.eq.s32.totalorder %s26, 1
      %p131 = por %p129, %p130
      %p133 = scmp.ne.s32.totalorder %s118, %s132
      %p134 = scmp.eq.s32.totalorder %s26, 0
      %p135 = por %p133, %p134
      %s137 = sadd.s32 %s136, 1
      %p140 = scmp.eq.s32.totalorder %s20, 1
      %p141 = scmp.ne.s32.totalorder %s136, %s138
      %p142 = scmp.eq.s32.totalorder %s20, 0
      %p143 = por %p141, %p142
      %p144 = scmp.ne.s32.totalorder %s136, %s138
      %p145 = scmp.eq.s32.totalorder %s25, 1
      %p146 = por %p144, %p145
      %p147 = scmp.ne.s32.totalorder %s138, %s139
      %p148 = scmp.eq.s32.totalorder %s25, 0
      %p149 = por %p147, %p148
      %p150 = scmp.ne.s32.totalorder %s138, %s139
      %p151 = scmp.eq.s32.totalorder %s26, 1
      %p152 = por %p150, %p151
      %p154 = scmp.ne.s32.totalorder %s139, %s153
      %p155 = scmp.eq.s32.totalorder %s26, 0
      %p156 = por %p154, %p155
      %s158 = sadd.s32 %s157, 1
      %p161 = scmp.eq.s32.totalorder %s20, 1
      %p162 = scmp.ne.s32.totalorder %s157, %s159
      %p163 = scmp.eq.s32.totalorder %s20, 0
      %p164 = por %p162, %p163
      %p165 = scmp.ne.s32.totalorder %s157, %s159
      %p166 = scmp.eq.s32.totalorder %s25, 1
      %p167 = por %p165, %p166
      %p168 = scmp.ne.s32.totalorder %s159, %s160
      %p169 = scmp.eq.s32.totalorder %s25, 0
      %p170 = por %p168, %p169
      %p171 = scmp.ne.s32.totalorder %s159, %s160
      %p172 = scmp.eq.s32.totalorder %s26, 1
      %p173 = por %p171, %p172
      %p175 = scmp.ne.s32.totalorder %s160, %s174
      %p176 = scmp.eq.s32.totalorder %s26, 0
      %p177 = por %p175, %p176
      %s178 = ssub.s32 %s27, %s39
      %p179 = scmp.eq.s32.totalorder %s178, 0
      %s181 = sadd.s32 %s180, 1
      %s182 = scalar_select %p179, %s180, %s181
      %p185 = pneg %p179
      %p186 = scmp.eq.s32.totalorder %s20, 1
      %p187 = por %p185, %p186
      %p188 = scmp.ne.s32.totalorder %s180, %s183
      %p189 = scmp.eq.s32.totalorder %s20, 0
      %p190 = por %p188, %p189
      %p191 = scmp.ne.s32.totalorder %s180, %s183
      %p192 = scmp.eq.s32.totalorder %s25, 1
      %p193 = por %p191, %p192
      %p194 = scmp.ne.s32.totalorder %s183, %s184
      %p195 = scmp.eq.s32.totalorder %s25, 0
      %p196 = por %p194, %p195
      %p197 = scmp.ne.s32.totalorder %s183, %s184
      %p198 = scmp.eq.s32.totalorder %s26, 1
      %p199 = por %p197, %p198
      %p201 = scmp.ne.s32.totalorder %s184, %s200
      %p202 = scmp.eq.s32.totalorder %s26, 0
      %p203 = por %p201, %p202
      %p204 = scmp.le.s32.totalorder 1, %s20
      %p205 = scmp.lt.s32.totalorder %s20, 3
      %p206 = pnand %p204, %p205
      %p207 = pneg %p206
      // Predicated region
      $region9: #{tpu_custom_call.1} parent=5 // pred_check
        _
      $region10: #{tpu_custom_call.1} parent=5 // pred_check_branch
        %209 = sbr.rel (%p206) target = $region12
      $region11: #{tpu_custom_call.1} parent=5 // pred_region
        %s210 = ssub.s32 %s20, 1
        // Predicated region
        $region13: #{tpu_custom_call.1} parent=11 // pred_check
          %p211 = pneg %p58
        $region14: #{tpu_custom_call.1} parent=11 // pred_check_branch
          %213 = sbr.rel (%p211) target = $region16
        $region15: #{tpu_custom_call.1} parent=11 // pred_region
          %s214 = smul.u32 2, %s30
          %s216 = ssub.s32 256, 256
          %217 = vsyncadd [#allocation4], %s216
          %s218 = smul.addr %s214, 128
          %s219 = scalar_lea.hbm %s0, %s218
          %s220 = sshll.u32 [#allocation3], 4
          %s221 = int_to_ptr.vmem [resolvable:$true] %s220
          %226 = dma.hbm_to_vmem [thread:$0]  %s219, 256, %s221, [#allocation4], 128, 128, 8
        $region16: #{tpu_custom_call.1} parent=11 // pred_fallthru
          _
        // Predicated region
        $region17: #{tpu_custom_call.1} parent=11 // pred_check
          %p227 = pneg %p107
        $region18: #{tpu_custom_call.1} parent=11 // pred_check_branch
          %229 = sbr.rel (%p227) target = $region20
        $region19: #{tpu_custom_call.1} parent=11 // pred_region
          %s231 = ssub.s32 512, 512
          %232 = vsyncadd [#allocation7], %s231
          %s233 = sshll.u32 [#allocation8], 4
          %s234 = int_to_ptr.vmem [resolvable:$true] %s233
          %239 = dma.hbm_to_vmem [thread:$0]  %s2, 512, %s234, [#allocation7], 128, 128, 8
        $region20: #{tpu_custom_call.1} parent=11 // pred_fallthru
          _
        // Predicated region
        $region21: #{tpu_custom_call.1} parent=11 // pred_check
          %p240 = pneg %p128
        $region22: #{tpu_custom_call.1} parent=11 // pred_check_branch
          %242 = sbr.rel (%p240) target = $region24
        $region23: #{tpu_custom_call.1} parent=11 // pred_region
          _
        $region24: #{tpu_custom_call.1} parent=11 // pred_fallthru
          _
        // Predicated region
        $region25: #{tpu_custom_call.1} parent=11 // pred_check
          %p243 = pneg %p149
        $region26: #{tpu_custom_call.1} parent=11 // pred_check_branch
          %245 = sbr.rel (%p243) target = $region28
        $region27: #{tpu_custom_call.1} parent=11 // pred_region
          %s247 = ssub.s32 2048, 2048
          %248 = vsyncadd [#allocation10], %s247
          %s249 = sshll.u32 [#allocation9], 4
          %s250 = int_to_ptr.vmem [resolvable:$true] %s249
          %255 = dma.hbm_to_vmem [thread:$0]  %s4, 2048, %s250, [#allocation10], 128, 128, 8
        $region28: #{tpu_custom_call.1} parent=11 // pred_fallthru
          _
        // Predicated region
        $region29: #{tpu_custom_call.1} parent=11 // pred_check
          %p256 = pneg %p170
        $region30: #{tpu_custom_call.1} parent=11 // pred_check_branch
          %258 = sbr.rel (%p256) target = $region32
        $region31: #{tpu_custom_call.1} parent=11 // pred_region
          _
        $region32: #{tpu_custom_call.1} parent=11 // pred_fallthru
          _
      $region12: #{tpu_custom_call.1} parent=5 // pred_fallthru
        _
      %p259 = scmp.lt.s32.totalorder %s20, 2
      // Predicated region
      $region33: #{tpu_custom_call.1} parent=5 // pred_check
        %p260 = pneg %p259
      $region34: #{tpu_custom_call.1} parent=5 // pred_check_branch
        %262 = sbr.rel (%p260) target = $region36
      $region35: #{tpu_custom_call.1} parent=5 // pred_region
        // Predicated region
        $region37: #{tpu_custom_call.1} parent=35 // pred_check
          %p263 = pneg %p80
        $region38: #{tpu_custom_call.1} parent=35 // pred_check_branch
          %265 = sbr.rel (%p263) target = $region40
        $region39: #{tpu_custom_call.1} parent=35 // pred_region
          %s266 = sand.u32 %s20, 1
          %s267 = scalar_lea.sflag [#allocation7], %s266
          %s268 = sand.u32 %s70, 1
          %s269 = smul.addr %s268, 8
          %s270 = scalar_lea.vmem [#allocation6], %s269
          %s272 = ssub.s32 128, 128
          %273 = vsyncadd %s267, %s272
          %s274 = sadd.s32 %s28, %s27
          %s275 = smul.addr %s274, 128
          %s276 = scalar_lea.hbm %s1, %s275
          %s278 = sshll.u32 %s270, 4
          %s279 = int_to_ptr.vmem [resolvable:$true] %s278
          %281 = dma.hbm_to_vmem [thread:$0]  %s276, 128, %s279, %s267
        $region40: #{tpu_custom_call.1} parent=35 // pred_fallthru
          _
      $region36: #{tpu_custom_call.1} parent=5 // pred_fallthru
        _
      %p282 = scmp.le.s32.totalorder 1, %s20
      %p283 = scmp.lt.s32.totalorder %s20, 3
      %p284 = pnand %p282, %p283
      %p285 = pneg %p284
      // Predicated region
      $region41: #{tpu_custom_call.1} parent=5 // pred_check
        _
      $region42: #{tpu_custom_call.1} parent=5 // pred_check_branch
        %287 = sbr.rel (%p284) target = $region44
      $region43: #{tpu_custom_call.1} parent=5 // pred_region
        %s288 = ssub.s32 %s20, 1
        // Predicated region
        $region45: #{tpu_custom_call.1} parent=43 // pred_check
          %p289 = pneg %p58
        $region46: #{tpu_custom_call.1} parent=43 // pred_check_branch
          %291 = sbr.rel (%p289) target = $region48
        $region47: #{tpu_custom_call.1} parent=43 // pred_region
          %292 = dma.done [#allocation4], 256
        $region48: #{tpu_custom_call.1} parent=43 // pred_fallthru
          _
        %s293 = sand.u32 %s25, 1
        %s294 = scalar_lea.sflag [#allocation7], %s293
        %s295 = sand.u32 %s73, 1
        %s296 = smul.addr %s295, 8
        %s297 = scalar_lea.vmem [#allocation6], %s296
        // Predicated region
        $region49: #{tpu_custom_call.1} parent=43 // pred_check
          %p298 = pneg %p86
        $region50: #{tpu_custom_call.1} parent=43 // pred_check_branch
          %300 = sbr.rel (%p298) target = $region52
        $region51: #{tpu_custom_call.1} parent=43 // pred_region
          %301 = dma.done %s294, 128
        $region52: #{tpu_custom_call.1} parent=43 // pred_fallthru
          _
        // Predicated region
        $region53: #{tpu_custom_call.1} parent=43 // pred_check
          %p302 = pneg %p107
        $region54: #{tpu_custom_call.1} parent=43 // pred_check_branch
          %304 = sbr.rel (%p302) target = $region56
        $region55: #{tpu_custom_call.1} parent=43 // pred_region
          %305 = dma.done [#allocation7], 512
        $region56: #{tpu_custom_call.1} parent=43 // pred_fallthru
          _
        // Predicated region
        $region57: #{tpu_custom_call.1} parent=43 // pred_check
          %p306 = pneg %p149
        $region58: #{tpu_custom_call.1} parent=43 // pred_check_branch
          %308 = sbr.rel (%p306) target = $region60
        $region59: #{tpu_custom_call.1} parent=43 // pred_region
          %309 = dma.done [#allocation10], 2048
        $region60: #{tpu_custom_call.1} parent=43 // pred_fallthru
          _
        %p310 = pneg %p58
        %p311 = pneg %p55
        %s312 = sand.u32 %s25, 1
        %s313 = scalar_lea.sflag [#allocation7], %s312
        %s314 = sand.u32 %s73, 1
        %s315 = smul.addr %s314, 8
        %s316 = scalar_lea.vmem [#allocation6], %s315
        %p317 = pneg %p86
        %p318 = pneg %p83
        %p319 = pneg %p107
        %p320 = pneg %p104
        %p321 = pneg %p128
        %p322 = pneg %p125
        %p323 = pneg %p149
        %p324 = pneg %p146
        %p325 = pneg %p170
        %p326 = pneg %p167
        %p327 = pneg %p196
        %p328 = pneg %p193
        %s329 = sand.u32 %s183, 1
        %s330 = scalar_lea.sflag [#allocation5], %s329
        %s331 = sand.u32 %s183, 1
        %s332 = smul.addr %s331, 8
        %s333 = scalar_lea.vmem [#allocation11], %s332
        %s334 = smul.u32 2, %s30
        %p335 = scmp.eq.s32.totalorder %s30, 0
        // Predicated region
        $region61: #{tpu_custom_call.1} parent=43 // pred_check
          %p336 = pneg %p335
        $region62: #{tpu_custom_call.1} parent=43 // pred_check_branch
          %338 = sbr.rel (%p336) target = $region64
        $region63: #{tpu_custom_call.1} parent=43 // pred_region
          %339 = vst [vmem:[#allocation2] sm:$0xff] 0.0
        $region64: #{tpu_custom_call.1} parent=43 // pred_fallthru
          _
        %v340 = vld [vmem:[#allocation3] sm:$0xff]
        %v341 = vld [vmem:[#allocation3 + $0x8] sm:$0xff]
        %v342 = vld [vmem:[#allocation8] sm:$0xff]
        %v343 = vld [vmem:[#allocation8 + $0x8] sm:$0xff]
        %v344 = vld [vmem:[#allocation8 + $0x10] sm:$0xff]
        %v345 = vld [vmem:[#allocation8 + $0x18] sm:$0xff]
        %vm346 = vcmask 261120
        %v348 = vsel %vm346, %v340, 0
        %v351 = vsel %vm346, %v341, 0
        %353 = vmatprep.subr.mxu0 0.0
        %354 = vmatpush1.msra.mxu0 %v342
        %355 = vmatprep.subr.mxu0 0.0
        %356 = vmatpush1.msra.mxu0 %v343
        %357 = vmatprep.subr.mxu0 0.0
        %358 = vmatpush1.msra.mxu0 %v344
        %359 = vmatprep.subr.mxu0 0.0
        %360 = vmatpush1.msra.mxu0 %v345
        %361 = vmatprep.subr.mxu0 0.0
        %362 = vmatpush1.msra.mxu0 0.0
        %363 = vmatprep.subr.mxu0 0.0
        %364 = vmatpush1.msra.mxu0 0.0
        %365 = vmatprep.subr.mxu0 0.0
        %366 = vmatpush1.msra.mxu0 0.0
        %367 = vmatprep.subr.mxu0 0.0
        %368 = vmatpush1.msra.mxu0 0.0
        %369 = vmatprep.subr.mxu0 0.0
        %370 = vmatpush1.msra.mxu0 0.0
        %371 = vmatprep.subr.mxu0 0.0
        %372 = vmatpush1.msra.mxu0 0.0
        %373 = vmatprep.subr.mxu0 0.0
        %374 = vmatpush1.msra.mxu0 0.0
        %375 = vmatprep.subr.mxu0 0.0
        %376 = vmatpush1.msra.mxu0 0.0
        %377 = vmatprep.subr.mxu0 0.0
        %378 = vmatpush1.msra.mxu0 0.0
        %379 = vmatprep.subr.mxu0 0.0
        %380 = vmatpush1.msra.mxu0 0.0
        %381 = vmatprep.subr.mxu0 0.0
        %382 = vmatpush1.msra.mxu0 0.0
        %383 = vmatprep.subr.mxu0 0.0
        %384 = vmatpush1.msra.mxu0 0.0
        %385 = vmatprep.subr.mxu0 0.0
        %386 = vmatpush1.msra.mxu0 0.0
        %387 = vmatprep.subr.mxu0 0.0
        %388 = vmatpush1.msra.mxu0 0.0
        %389 = vmatprep.subr.mxu0 0.0
        %390 = vmatpush1.msra.mxu0 0.0
        %391 = vmatprep.subr.mxu0 0.0
        %392 = vmatpush1.msra.mxu0 0.0
        %393 = vmatprep.subr.mxu0 0.0
        %394 = vmatpush1.msra.mxu0 0.0
        %395 = vmatprep.subr.mxu0 0.0
        %396 = vmatpush1.msra.mxu0 0.0
        %397 = vmatprep.subr.mxu0 0.0
        %398 = vmatpush1.msra.mxu0 0.0
        %399 = vmatprep.subr.mxu0 0.0
        %400 = vmatpush1.msra.mxu0 0.0
        %401 = vmatprep.subr.mxu0 0.0
        %402 = vmatpush1.msra.mxu0 0.0
        %403 = vmatprep.subr.mxu0 0.0
        %404 = vmatpush1.msra.mxu0 0.0
        %405 = vmatprep.subr.mxu0 0.0
        %406 = vmatpush1.msra.mxu0 0.0
        %407 = vmatprep.subr.mxu0 0.0
        %408 = vmatpush1.msra.mxu0 0.0
        %409 = vmatprep.subr.mxu0 0.0
        %410 = vmatpush1.msra.mxu0 0.0
        %411 = vmatprep.subr.mxu0 0.0
        %412 = vmatpush1.msra.mxu0 0.0
        %413 = vmatprep.subr.mxu0 0.0
        %414 = vmatpush1.msra.mxu0 0.0
        %415 = vmatprep.subr.mxu0 0.0
        %416 = vmatpush1.msra.mxu0 0.0
        %417 = vmatprep.mubr.f32.mxu0 0.0
        %418 = vmatmul.mubr.f32.gmra.mrb[0].mxu0 %v348
        %v419 = vpop.f32.mrb[0].mxu0
        %v420 = vadd.f32 0.0, %v419
        %v421 = vpop.f32.mrb[0].mxu0
        %422 = vmatprep.mubr.f32.mxu0 0.0
        %423 = vmatmul.mubr.f32.gmra.mrb[0].mxu0 %v351
        %v424 = vpop.f32.mrb[0].mxu0
        %v425 = vadd.f32 0.0, %v424
        %v426 = vpop.f32.mrb[0].mxu0
        %427 = vdwg.mxu0
        %v428 = vld [vmem:[#allocation2] sm:$0xff]
        %v429 = vld [vmem:[%s297] sm:$0xff]
        %vm430 = vcmask 130048
        %v432 = vsel %vm430, %v429, 0
        %434 = vmatprep.subr.mxu0 0.0
        %435 = vmatpush1.msra.mxu0 %v420
        %436 = vmatprep.subr.mxu0 0.0
        %437 = vmatpush1.msra.mxu0 %v425
        %438 = vmatprep.subr.mxu0 0.0
        %439 = vmatpush1.msra.mxu0 0.0
        %440 = vmatprep.subr.mxu0 0.0
        %441 = vmatpush1.msra.mxu0 0.0
        %442 = vmatprep.subr.mxu0 0.0
        %443 = vmatpush1.msra.mxu0 0.0
        %444 = vmatprep.subr.mxu0 0.0
        %445 = vmatpush1.msra.mxu0 0.0
        %446 = vmatprep.subr.mxu0 0.0
        %447 = vmatpush1.msra.mxu0 0.0
        %448 = vmatprep.subr.mxu0 0.0
        %449 = vmatpush1.msra.mxu0 0.0
        %450 = vmatprep.subr.mxu0 0.0
        %451 = vmatpush1.msra.mxu0 0.0
        %452 = vmatprep.subr.mxu0 0.0
        %453 = vmatpush1.msra.mxu0 0.0
        %454 = vmatprep.subr.mxu0 0.0
        %455 = vmatpush1.msra.mxu0 0.0
        %456 = vmatprep.subr.mxu0 0.0
        %457 = vmatpush1.msra.mxu0 0.0
        %458 = vmatprep.subr.mxu0 0.0
        %459 = vmatpush1.msra.mxu0 0.0
        %460 = vmatprep.subr.mxu0 0.0
        %461 = vmatpush1.msra.mxu0 0.0
        %462 = vmatprep.subr.mxu0 0.0
        %463 = vmatpush1.msra.mxu0 0.0
        %464 = vmatprep.subr.mxu0 0.0
        %465 = vmatpush1.msra.mxu0 0.0
        %466 = vmatprep.subr.mxu0 0.0
        %467 = vmatpush1.msra.mxu0 0.0
        %468 = vmatprep.subr.mxu0 0.0
        %469 = vmatpush1.msra.mxu0 0.0
        %470 = vmatprep.subr.mxu0 0.0
        %471 = vmatpush1.msra.mxu0 0.0
        %472 = vmatprep.subr.mxu0 0.0
        %473 = vmatpush1.msra.mxu0 0.0
        %474 = vmatprep.subr.mxu0 0.0
        %475 = vmatpush1.msra.mxu0 0.0
        %476 = vmatprep.subr.mxu0 0.0
        %477 = vmatpush1.msra.mxu0 0.0
        %478 = vmatprep.subr.mxu0 0.0
        %479 = vmatpush1.msra.mxu0 0.0
        %480 = vmatprep.subr.mxu0 0.0
        %481 = vmatpush1.msra.mxu0 0.0
        %482 = vmatprep.subr.mxu0 0.0
        %483 = vmatpush1.msra.mxu0 0.0
        %484 = vmatprep.subr.mxu0 0.0
        %485 = vmatpush1.msra.mxu0 0.0
        %486 = vmatprep.subr.mxu0 0.0
        %487 = vmatpush1.msra.mxu0 0.0
        %488 = vmatprep.subr.mxu0 0.0
        %489 = vmatpush1.msra.mxu0 0.0
        %490 = vmatprep.subr.mxu0 0.0
        %491 = vmatpush1.msra.mxu0 0.0
        %492 = vmatprep.subr.mxu0 0.0
        %493 = vmatpush1.msra.mxu0 0.0
        %494 = vmatprep.subr.mxu0 0.0
        %495 = vmatpush1.msra.mxu0 0.0
        %496 = vmatprep.subr.mxu0 0.0
        %497 = vmatpush1.msra.mxu0 0.0
        %498 = vmatprep.mubr.f32.mxu0 0.0
        %499 = vmatmul.mubr.f32.gmra.mrb[0].mxu0 %v432
        %v500 = vpop.f32.mrb[0].mxu0
        %v501 = vadd.f32 0.0, %v500
        %v502 = vpop.f32.mrb[0].mxu0
        %503 = vdwg.mxu0
        %v504 = vadd.f32 %v428, %v501
        %505 = vst [vmem:[#allocation2] sm:$0xff] %v504
        // Predicated region
        $region65: #{tpu_custom_call.1} parent=43 // pred_check
          %p506 = pneg %p335
        $region66: #{tpu_custom_call.1} parent=43 // pred_check_branch
          %508 = sbr.rel (%p506) target = $region68
        $region67: #{tpu_custom_call.1} parent=43 // pred_region
          %v509 = vld [vmem:[#allocation2] sm:$0xff]
          %v510 = vld [vmem:[%s3] sm:$0x1]
          %v512 = vlaneseq
          %v513 = vshrl.u32 %v512, 7
          %v514 = vsub.s32 0, %v513
          %v515 = vrot.slane %v510, %v514
          %v517 = vadd.f32 %v509, %v515
          %v518 = vmax.f32 %v517, 0.0
          %v519 = vld [vmem:[#allocation9] sm:$0xff]
          %v520 = vld [vmem:[#allocation9 + $0x8] sm:$0xff]
          %v521 = vld [vmem:[#allocation9 + $0x10] sm:$0xff]
          %v522 = vld [vmem:[#allocation9 + $0x18] sm:$0xff]
          %v523 = vld [vmem:[#allocation9 + $0x20] sm:$0xff]
          %v524 = vld [vmem:[#allocation9 + $0x28] sm:$0xff]
          %v525 = vld [vmem:[#allocation9 + $0x30] sm:$0xff]
          %v526 = vld [vmem:[#allocation9 + $0x38] sm:$0xff]
          %v527 = vld [vmem:[#allocation9 + $0x40] sm:$0xff]
          %v528 = vld [vmem:[#allocation9 + $0x48] sm:$0xff]
          %v529 = vld [vmem:[#allocation9 + $0x50] sm:$0xff]
          %v530 = vld [vmem:[#allocation9 + $0x58] sm:$0xff]
          %v531 = vld [vmem:[#allocation9 + $0x60] sm:$0xff]
          %v532 = vld [vmem:[#allocation9 + $0x68] sm:$0xff]
          %v533 = vld [vmem:[#allocation9 + $0x70] sm:$0xff]
          %v534 = vld [vmem:[#allocation9 + $0x78] sm:$0xff]
          %v535 = vld [vmem:[%s5] sm:$0x1]
          %v537 = vlaneseq
          %v538 = vshrl.u32 %v537, 7
          %v539 = vsub.s32 0, %v538
          %v540 = vrot.slane %v535, %v539
          %542 = vmatprep.subr.mxu0 0.0
          %543 = vmatpush1.msra.mxu0 %v519
          %544 = vmatprep.subr.mxu0 0.0
          %545 = vmatpush1.msra.mxu0 %v520
          %546 = vmatprep.subr.mxu0 0.0
          %547 = vmatpush1.msra.mxu0 %v521
          %548 = vmatprep.subr.mxu0 0.0
          %549 = vmatpush1.msra.mxu0 %v522
          %550 = vmatprep.subr.mxu0 0.0
          %551 = vmatpush1.msra.mxu0 %v523
          %552 = vmatprep.subr.mxu0 0.0
          %553 = vmatpush1.msra.mxu0 %v524
          %554 = vmatprep.subr.mxu0 0.0
          %555 = vmatpush1.msra.mxu0 %v525
          %556 = vmatprep.subr.mxu0 0.0
          %557 = vmatpush1.msra.mxu0 %v526
          %558 = vmatprep.subr.mxu0 0.0
          %559 = vmatpush1.msra.mxu0 %v527
          %560 = vmatprep.subr.mxu0 0.0
          %561 = vmatpush1.msra.mxu0 %v528
          %562 = vmatprep.subr.mxu0 0.0
          %563 = vmatpush1.msra.mxu0 %v529
          %564 = vmatprep.subr.mxu0 0.0
          %565 = vmatpush1.msra.mxu0 %v530
          %566 = vmatprep.subr.mxu0 0.0
          %567 = vmatpush1.msra.mxu0 %v531
          %568 = vmatprep.subr.mxu0 0.0
          %569 = vmatpush1.msra.mxu0 %v532
          %570 = vmatprep.subr.mxu0 0.0
          %571 = vmatpush1.msra.mxu0 %v533
          %572 = vmatprep.subr.mxu0 0.0
          %573 = vmatpush1.msra.mxu0 %v534
          %574 = vmatprep.subr.mxu0 0.0
          %575 = vmatpush1.msra.mxu0 0.0
          %576 = vmatprep.subr.mxu0 0.0
          %577 = vmatpush1.msra.mxu0 0.0
          %578 = vmatprep.subr.mxu0 0.0
          %579 = vmatpush1.msra.mxu0 0.0
          %580 = vmatprep.subr.mxu0 0.0
          %581 = vmatpush1.msra.mxu0 0.0
          %582 = vmatprep.subr.mxu0 0.0
          %583 = vmatpush1.msra.mxu0 0.0
          %584 = vmatprep.subr.mxu0 0.0
          %585 = vmatpush1.msra.mxu0 0.0
          %586 = vmatprep.subr.mxu0 0.0
          %587 = vmatpush1.msra.mxu0 0.0
          %588 = vmatprep.subr.mxu0 0.0
          %589 = vmatpush1.msra.mxu0 0.0
          %590 = vmatprep.subr.mxu0 0.0
          %591 = vmatpush1.msra.mxu0 0.0
          %592 = vmatprep.subr.mxu0 0.0
          %593 = vmatpush1.msra.mxu0 0.0
          %594 = vmatprep.subr.mxu0 0.0
          %595 = vmatpush1.msra.mxu0 0.0
          %596 = vmatprep.subr.mxu0 0.0
          %597 = vmatpush1.msra.mxu0 0.0
          %598 = vmatprep.subr.mxu0 0.0
          %599 = vmatpush1.msra.mxu0 0.0
          %600 = vmatprep.subr.mxu0 0.0
          %601 = vmatpush1.msra.mxu0 0.0
          %602 = vmatprep.subr.mxu0 0.0
          %603 = vmatpush1.msra.mxu0 0.0
          %604 = vmatprep.subr.mxu0 0.0
          %605 = vmatpush1.msra.mxu0 0.0
          %606 = vmatprep.mubr.f32.mxu0 0.0
          %607 = vmatmul.mubr.f32.gmra.mrb[0].mxu0 %v518
          %v608 = vpop.f32.mrb[0].mxu0
          %v609 = vadd.f32 %v540, %v608
          %v610 = vpop.f32.mrb[0].mxu0
          %611 = vdwg.mxu0
          %612 = vst [vmem:[%s333] sm:$0xff] %v609
        $region68: #{tpu_custom_call.1} parent=43 // pred_fallthru
          _
        %s613 = sand.u32 %s183, 1
        %s614 = scalar_lea.sflag [#allocation5], %s613
        %s615 = sand.u32 %s183, 1
        %s616 = smul.addr %s615, 8
        %s617 = scalar_lea.vmem [#allocation11], %s616
        // Predicated region
        $region69: #{tpu_custom_call.1} parent=43 // pred_check
          %p618 = pneg %p193
        $region70: #{tpu_custom_call.1} parent=43 // pred_check_branch
          %620 = sbr.rel (%p618) target = $region72
        $region71: #{tpu_custom_call.1} parent=43 // pred_region
          %s622 = ssub.s32 128, 128
          %623 = vsyncadd %s614, %s622
          %s624 = smul.addr %s29, 128
          %s625 = scalar_lea.hbm %s6, %s624
          %s627 = sshll.u32 %s617, 4
          %s628 = int_to_ptr.vmem [resolvable:$true] %s627
          %630 = dma.vmem_to_hbm [thread:$0]  %s628, 128, %s625, %s614
        $region72: #{tpu_custom_call.1} parent=43 // pred_fallthru
          _
      $region44: #{tpu_custom_call.1} parent=5 // pred_fallthru
        _
      %p631 = scmp.le.s32.totalorder 2, %s20
      // Predicated region
      $region73: #{tpu_custom_call.1} parent=5 // pred_check
        %p632 = pneg %p631
      $region74: #{tpu_custom_call.1} parent=5 // pred_check_branch
        %634 = sbr.rel (%p632) target = $region76
      $region75: #{tpu_custom_call.1} parent=5 // pred_region
        %s635 = ssub.s32 %s20, 2
        // Predicated region
        $region77: #{tpu_custom_call.1} parent=75 // pred_check
          %p636 = pneg %p199
        $region78: #{tpu_custom_call.1} parent=75 // pred_check_branch
          %638 = sbr.rel (%p636) target = $region80
        $region79: #{tpu_custom_call.1} parent=75 // pred_region
          %s639 = sand.u32 %s184, 1
          %s640 = scalar_lea.sflag [#allocation5], %s639
          %s641 = sand.u32 %s184, 1
          %s642 = smul.addr %s641, 8
          %s643 = scalar_lea.vmem [#allocation11], %s642
          %644 = dma.done %s640, 128
        $region80: #{tpu_custom_call.1} parent=75 // pred_fallthru
          _
      $region76: #{tpu_custom_call.1} parent=5 // pred_fallthru
        _
    $region6: #{tpu_custom_call.1} parent=1 // loop_footer
      %s24 = sadd.s32 1, %s20
    $region7: #{tpu_custom_call.1} parent=1 // loop_footer_branch
      %19 = sbr.rel target = $region3
    $region8: #{tpu_custom_call.1} parent=1 // loop_exit
      _
    %645 = vsyncpa [#allocation4], 1
    %s646 = scalar_lea.sflag [#allocation4], 1
    %647 = vsyncpa %s646, 1
    %648 = vsyncpa [#allocation7], 1
    %s649 = scalar_lea.sflag [#allocation7], 1
    %650 = vsyncpa %s649, 1
    %651 = vsyncpa [#allocation10], 1
    %652 = vsyncpa [#allocation5], 1
    %s653 = scalar_lea.sflag [#allocation5], 1
    %654 = vsyncpa %s653, 1

</llo_original>
